<compile_context>
chip_gen: v7x
topology: tpu7x:2x2x1
jax: 0.10.0
libtpu: 0.0.40
codegen_flags: <defaults>
</compile_context>

<pallas_src>
import math

import jax
import jax.numpy as jnp
from jax.experimental import pallas as pl
from jax.experimental.pallas import tpu as pltpu

ALPHA = 2          # focal loss alpha (hardcoded as squarings below)
BETA = 4           # focal loss beta  (hardcoded as two squarings below)
CLAMP_EPS = 1e-4
_LOG_LO = math.log(CLAMP_EPS)        # log(eps)
_LOG_HI = math.log1p(-CLAMP_EPS)     # log(1 - eps)


def _focal_loss_kernel(pred_ref, gt_ref, out_ref):
    """One (tile_rows, lanes) block -> (loss_sum, num_pos) partials."""
    x = pred_ref[...].astype(jnp.float32)
    gt = gt_ref[...].astype(jnp.float32)

    # Stable softplus(x) = log(1 + e^x); exp(-|x|) is in (0, 1].
    sp = jnp.maximum(x, 0.0) + jnp.log(1.0 + jnp.exp(-jnp.abs(x)))
    log_s = x - sp          # log(sigmoid(x))
    log_1ms = -sp           # log(1 - sigmoid(x))

    # log(clip(sigmoid(x), eps, 1-eps)) == clip(log(sigmoid(x)), log eps, log(1-eps))
    log_p = jnp.clip(log_s, _LOG_LO, _LOG_HI)
    log_1mp = jnp.clip(log_1ms, _LOG_LO, _LOG_HI)
    p = jnp.clip(jnp.exp(log_s), CLAMP_EPS, 1.0 - CLAMP_EPS)
    one_m_p = 1.0 - p

    pos = (gt == 1.0).astype(jnp.float32)
    neg = (gt < 1.0).astype(jnp.float32)       # keep: padded gt == 2.0 relies on it
    one_m_gt = 1.0 - gt
    sq = one_m_gt * one_m_gt
    neg_w = sq * sq                            # (1 - gt)^BETA, BETA = 4

    pos_loss = log_p * (one_m_p * one_m_p) * pos        # alpha = 2
    neg_loss = log_1mp * (p * p) * neg_w * neg

    out_ref[0, 0] = jnp.sum(pos_loss + neg_loss)
    out_ref[0, 1] = jnp.sum(pos)


def _choose_geometry(n_elems):
    """Pick (lanes, tile_rows, n_blocks) for the flattened element count."""
    lanes = 1024 if n_elems >= 1024 else 128
    # ~512K f32 elements (2 MiB) per input block; 2 inputs x 2 buffers = 8 MiB,
    # safely under the default scoped-VMEM limit on v5e/v6e/v7x.
    target_rows = max(8, (512 * 1024) // lanes)
    rows_needed = -(-n_elems // lanes)            # ceil
    rows_aligned = -(-rows_needed // 8) * 8       # multiple of 8 sublanes
    tile_rows = min(target_rows, rows_aligned)
    n_blocks = -(-rows_aligned // tile_rows)
    return lanes, tile_rows, n_blocks


def focal_loss_pallas(pred_hm, gt_centers):
    """pred_hm, gt_centers: (B, C, H, W) -> scalar f32 focal loss."""
    assert pred_hm.shape == gt_centers.shape
    n = pred_hm.size
    lanes, tile_rows, n_blocks = _choose_geometry(n)
    padded_rows = n_blocks * tile_rows
    padded_n = padded_rows * lanes

    pred_flat = pred_hm.reshape(-1)
    gt_flat = gt_centers.reshape(-1)
    pad = padded_n - n
    if pad:
        # pred pad value is irrelevant; gt = 2.0 makes pos == neg == 0 exactly,
        # so padded elements contribute exactly zero to every partial sum.
        pred_flat = jnp.concatenate(
            [pred_flat, jnp.zeros((pad,), pred_flat.dtype)])
        gt_flat = jnp.concatenate(
            [gt_flat, jnp.full((pad,), 2.0, gt_flat.dtype)])

    pred2d = pred_flat.reshape(padded_rows, lanes)
    gt2d = gt_flat.reshape(padded_rows, lanes)

    partials = pl.pallas_call(
        _focal_loss_kernel,
        out_shape=jax.ShapeDtypeStruct((n_blocks, 2), jnp.float32),
        grid_spec=pltpu.PrefetchScalarGridSpec(
            num_scalar_prefetch=0,
            grid=(n_blocks,),
            in_specs=[
                pl.BlockSpec((tile_rows, lanes), lambda b: (b, 0)),
                pl.BlockSpec((tile_rows, lanes), lambda b: (b, 0)),
            ],
            out_specs=pl.BlockSpec((1, 2), lambda b: (b, 0),
                                   memory_space=pltpu.SMEM),
        ),
        compiler_params=pltpu.CompilerParams(
            dimension_semantics=("parallel",)),
    )(pred2d, gt2d)

    total = jnp.sum(partials[:, 0])
    num_pos = jnp.sum(partials[:, 1])
    # When num_pos == 0 every pos_loss term is identically 0, so -total equals
    # -neg_sum: the single expression below matches both reference branches.
    return -total / jnp.maximum(num_pos, 1.0)


def focal_loss_forward(pred, gt):
    """Mirrors FocalLoss(train=True, centernet_output=True).forward.

    pred: tuple whose first element is a dict with key 'hm' -> (B, C, H, W)
    gt:   (B, C+2, H, W); last two channels are offsets, dropped here.
    """
    pred_centers = pred[0]["hm"]
    gt_centers = gt[:, :-2, :, :]
    return focal_loss_pallas(pred_centers, gt_centers)


def _reference(pred_hm, gt_centers):
    p = jnp.clip(jax.nn.sigmoid(pred_hm.astype(jnp.float32)),
                 CLAMP_EPS, 1 - CLAMP_EPS)
    gt = gt_centers.astype(jnp.float32)
    pos = (gt == 1.0).astype(jnp.float32)
    neg = (gt < 1.0).astype(jnp.float32)
    neg_w = (1.0 - gt) ** BETA
    pos_loss = jnp.log(p) * (1.0 - p) ** ALPHA * pos
    neg_loss = jnp.log(1.0 - p) * p ** ALPHA * neg_w * neg
    num_pos = pos.sum()
    return jnp.where(num_pos == 0, -neg_loss.sum(),
                     -(pos_loss.sum() + neg_loss.sum()) / num_pos)


if __name__ == "__main__":
    key = jax.random.PRNGKey(0)
    k1, k2 = jax.random.split(key)

    B, C, H, W = 2, 4, 16, 16
    pred_hm = jax.random.normal(k1, (B, C, H, W), dtype=jnp.float32)
    # gt heatmaps in [0, 1); gt also carries 2 extra (offset) channels.
    gt = jax.random.uniform(k2, (B, C + 2, H, W), dtype=jnp.float32)
    # place a few exact-1.0 "center" peaks so num_pos > 0
    gt = gt.at[0, 0, 4, 4].set(1.0)
    gt = gt.at[1, 2, 8, 10].set(1.0)
    gt = gt.at[1, 3, 1, 15].set(1.0)

    pred = ({"hm": pred_hm},)  # CenterNet-style output: tuple of dicts

    loss = focal_loss_forward(pred, gt)
    loss = jax.block_until_ready(loss)

    ref = _reference(pred_hm, gt[:, :-2, :, :])
    assert jnp.allclose(loss, ref, rtol=1e-5, atol=1e-5), (loss, ref)

    # also check the num_pos == 0 branch (no peaks anywhere)
    gt0 = jax.random.uniform(k2, (B, C + 2, H, W), dtype=jnp.float32) * 0.9
    loss0 = jax.block_until_ready(focal_loss_forward(({"hm": pred_hm},), gt0))
    ref0 = _reference(pred_hm, gt0[:, :-2, :, :])
    assert jnp.allclose(loss0, ref0, rtol=1e-5, atol=1e-5), (loss0, ref0)

    print("KERNEL_OK")
</pallas_src>

<mosaic_0001>
module attributes {stable_mosaic.version = 11 : i64} {
  func.func @_focal_loss_kernel(%arg0: i32, %arg1: memref<8x1024xf32, #tpu.memory_space<vmem>>, %arg2: memref<8x1024xf32, #tpu.memory_space<vmem>>, %arg3: memref<1x2xf32, #tpu.memory_space<smem>>) attributes {dimension_semantics = [#tpu.dimension_semantics<parallel>], iteration_bounds = array<i64: 1>, scalar_prefetch = 0 : i64, scratch_operands = 0 : i64, tpu.core_type = #tpu.core_type<tc>, window_params = [{transform_indices = @transform_0, window_bounds = array<i64: 8, 1024>}, {transform_indices = @transform_1, window_bounds = array<i64: 8, 1024>}, {transform_indices = @transform_2, window_bounds = array<i64: 1, 2>}]} {
    %c0 = arith.constant 0 : index
    %c0_0 = arith.constant 0 : index
    %0 = vector.load %arg1[%c0, %c0_0] : memref<8x1024xf32, #tpu.memory_space<vmem>>, vector<8x1024xf32>
    %c0_1 = arith.constant 0 : index
    %c0_2 = arith.constant 0 : index
    %1 = vector.load %arg2[%c0_1, %c0_2] : memref<8x1024xf32, #tpu.memory_space<vmem>>, vector<8x1024xf32>
    %cst = arith.constant 0.000000e+00 : f32
    %2 = vector.broadcast %cst : f32 to vector<8x1024xf32>
    %3 = arith.maximumf %0, %2 : vector<8x1024xf32>
    %4 = math.absf %0 : vector<8x1024xf32>
    %cst_3 = arith.constant 0.000000e+00 : f32
    %5 = vector.broadcast %cst_3 : f32 to vector<8x1024xf32>
    %6 = arith.subf %5, %4 : vector<8x1024xf32>
    %7 = math.exp %6 : vector<8x1024xf32>
    %cst_4 = arith.constant 1.000000e+00 : f32
    %8 = vector.broadcast %cst_4 : f32 to vector<8x1024xf32>
    %9 = arith.addf %8, %7 : vector<8x1024xf32>
    %10 = math.log %9 : vector<8x1024xf32>
    %11 = arith.addf %3, %10 : vector<8x1024xf32>
    %12 = arith.subf %0, %11 : vector<8x1024xf32>
    %cst_5 = arith.constant 0.000000e+00 : f32
    %13 = vector.broadcast %cst_5 : f32 to vector<8x1024xf32>
    %14 = arith.subf %13, %11 : vector<8x1024xf32>
    %cst_6 = arith.constant -9.21034049 : f32
    %cst_7 = arith.constant -1.000050e-04 : f32
    %15 = vector.broadcast %cst_6 : f32 to vector<8x1024xf32>
    %16 = arith.maximumf %15, %12 : vector<8x1024xf32>
    %17 = vector.broadcast %cst_7 : f32 to vector<8x1024xf32>
    %18 = arith.minimumf %17, %16 : vector<8x1024xf32>
    %cst_8 = arith.constant -9.21034049 : f32
    %cst_9 = arith.constant -1.000050e-04 : f32
    %19 = vector.broadcast %cst_8 : f32 to vector<8x1024xf32>
    %20 = arith.maximumf %19, %14 : vector<8x1024xf32>
    %21 = vector.broadcast %cst_9 : f32 to vector<8x1024xf32>
    %22 = arith.minimumf %21, %20 : vector<8x1024xf32>
    %23 = math.exp %12 : vector<8x1024xf32>
    %cst_10 = arith.constant 9.99999974E-5 : f32
    %cst_11 = arith.constant 0.999899983 : f32
    %24 = vector.broadcast %cst_10 : f32 to vector<8x1024xf32>
    %25 = arith.maximumf %24, %23 : vector<8x1024xf32>
    %26 = vector.broadcast %cst_11 : f32 to vector<8x1024xf32>
    %27 = arith.minimumf %26, %25 : vector<8x1024xf32>
    %cst_12 = arith.constant 1.000000e+00 : f32
    %28 = vector.broadcast %cst_12 : f32 to vector<8x1024xf32>
    %29 = arith.subf %28, %27 : vector<8x1024xf32>
    %cst_13 = arith.constant 1.000000e+00 : f32
    %30 = vector.broadcast %cst_13 : f32 to vector<8x1024xf32>
    %31 = arith.cmpf oeq, %1, %30 : vector<8x1024xf32>
    %32 = arith.extui %31 : vector<8x1024xi1> to vector<8x1024xi32>
    %33 = arith.sitofp %32 : vector<8x1024xi32> to vector<8x1024xf32>
    %cst_14 = arith.constant 1.000000e+00 : f32
    %34 = vector.broadcast %cst_14 : f32 to vector<8x1024xf32>
    %35 = arith.cmpf olt, %1, %34 : vector<8x1024xf32>
    %36 = arith.extui %35 : vector<8x1024xi1> to vector<8x1024xi32>
    %37 = arith.sitofp %36 : vector<8x1024xi32> to vector<8x1024xf32>
    %cst_15 = arith.constant 1.000000e+00 : f32
    %38 = vector.broadcast %cst_15 : f32 to vector<8x1024xf32>
    %39 = arith.subf %38, %1 : vector<8x1024xf32>
    %40 = arith.mulf %39, %39 : vector<8x1024xf32>
    %41 = arith.mulf %40, %40 : vector<8x1024xf32>
    %42 = arith.mulf %29, %29 : vector<8x1024xf32>
    %43 = arith.mulf %18, %42 : vector<8x1024xf32>
    %44 = arith.mulf %43, %33 : vector<8x1024xf32>
    %45 = arith.mulf %27, %27 : vector<8x1024xf32>
    %46 = arith.mulf %22, %45 : vector<8x1024xf32>
    %47 = arith.mulf %46, %41 : vector<8x1024xf32>
    %48 = arith.mulf %47, %37 : vector<8x1024xf32>
    %49 = arith.addf %44, %48 : vector<8x1024xf32>
    %50 = vector.shape_cast %49 : vector<8x1024xf32> to vector<1x8x1024xf32>
    %cst_16 = arith.constant dense<0.000000e+00> : vector<1xf32>
    %51 = vector.multi_reduction <add>, %50, %cst_16 [1, 2] : vector<1x8x1024xf32> to vector<1xf32>
    %52 = vector.shape_cast %51 : vector<1xf32> to vector<1x1x1xf32>
    %53 = vector.extract %52[0, 0, 0] : f32 from vector<1x1x1xf32>
    %c0_17 = arith.constant 0 : index
    %c0_18 = arith.constant 0 : index
    %54 = memref.load %arg3[%c0_17, %c0_18] : memref<1x2xf32, #tpu.memory_space<smem>>
    memref.store %53, %arg3[%c0_17, %c0_18] : memref<1x2xf32, #tpu.memory_space<smem>>
    %55 = vector.shape_cast %33 : vector<8x1024xf32> to vector<1x8x1024xf32>
    %cst_19 = arith.constant dense<0.000000e+00> : vector<1xf32>
    %56 = vector.multi_reduction <add>, %55, %cst_19 [1, 2] : vector<1x8x1024xf32> to vector<1xf32>
    %57 = vector.shape_cast %56 : vector<1xf32> to vector<1x1x1xf32>
    %58 = vector.extract %57[0, 0, 0] : f32 from vector<1x1x1xf32>
    %c0_20 = arith.constant 0 : index
    %c1 = arith.constant 1 : index
    %59 = memref.load %arg3[%c0_20, %c1] : memref<1x2xf32, #tpu.memory_space<smem>>
    memref.store %58, %arg3[%c0_20, %c1] : memref<1x2xf32, #tpu.memory_space<smem>>
    return
  }
  func.func @transform_0(%arg0: i32) -> (i32, i32) {
    %c0_i32 = arith.constant 0 : i32
    %c0_i32_0 = arith.constant 0 : i32
    return %arg0, %c0_i32 : i32, i32
  }
  func.func @transform_1(%arg0: i32) -> (i32, i32) {
    %c0_i32 = arith.constant 0 : i32
    %c0_i32_0 = arith.constant 0 : i32
    return %arg0, %c0_i32 : i32, i32
  }
  func.func @transform_2(%arg0: i32) -> (i32, i32) {
    %c0_i32 = arith.constant 0 : i32
    %c0_i32_0 = arith.constant 0 : i32
    return %arg0, %c0_i32 : i32, i32
  }
}

</mosaic_0001>

<llo_original>
// kernel: tpu_custom_call.1
$region0: #{tpu_custom_call.1}
  #allocation0 [shape = 'u32[]', space=smem, size = 0x4, offset = 0x4, fixed_abs, tag = 'smem constant byte address 0x4 - core index']
  #allocation1 [shape = 'u32[144,128]{1,0:T(1,128)}', space=vmem, size = 0x12000, scoped, tag = 'internal scratch']
  %s0 = inlined_call_operand.hbm [shape: f32[8,1024], index: 0, kind: input, shape index: {}]
  %s1 = inlined_call_operand.hbm [shape: f32[8,1024], index: 1, kind: input, shape index: {}]
  %s2 = inlined_call_operand.hbm [shape: f32[1,2], index: 2, kind: output, shape index: {}]
  %s3 = sld [smem:[#allocation0]]
  $region26: #{tpu_custom_call.1} parent=0
    _
  %s5 = ssub.s32 1, %s3
  %s6 = scalar_select 0, %s5, %s3
  $region1: #{tpu_custom_call.1} parent=0
    #allocation2 [shape = 'u8[32768]{0}', space=vmem, size = 0x8000, scoped, tag = 'input window, operand 0, single buffered']
    #allocation3 [shape = 's32[1]{0}', space=sflag, size = 0x4, scoped, tag = 'scoped memory for tpu_custom_call.1']
    #allocation4 [shape = 's32[1]{0}', space=sflag, size = 0x4, scoped, tag = 'scoped memory for tpu_custom_call.1']
    #allocation5 [shape = 'u8[32768]{0}', space=vmem, size = 0x8000, scoped, tag = 'input window, operand 1, single buffered']
    #allocation6 [shape = 's32[1]{0}', space=sflag, size = 0x4, scoped, tag = 'scoped memory for tpu_custom_call.1']
    #allocation7 [shape = 'u8[512]{0}', space=smem, size = 0x200, scoped, tag = 'output window, operand 0, single buffered']
    %7 = vsyncpa [#allocation3], 0
    %8 = vsyncpa [#allocation6], 0
    %9 = vsyncpa [#allocation4], 0
    // Predicated region
    $region2: #{tpu_custom_call.1} parent=1 // pred_check
      _
    $region3: #{tpu_custom_call.1} parent=1 // pred_check_branch
      %11 = sbr.rel (0) target = $region5
    $region4: #{tpu_custom_call.1} parent=1 // pred_region
      %s13 = ssub.s32 1024, 1024
      %14 = vsyncadd [#allocation3], %s13
      %s16 = sshll.u32 [#allocation2], 4
      %s17 = int_to_ptr.vmem [resolvable:$true] %s16
      %19 = dma.hbm_to_vmem [thread:$0]  %s0, 1024, %s17, [#allocation3]
    $region5: #{tpu_custom_call.1} parent=1 // pred_fallthru
      _
    // Predicated region
    $region6: #{tpu_custom_call.1} parent=1 // pred_check
      _
    $region7: #{tpu_custom_call.1} parent=1 // pred_check_branch
      %21 = sbr.rel (0) target = $region9
    $region8: #{tpu_custom_call.1} parent=1 // pred_region
      %s23 = ssub.s32 1024, 1024
      %24 = vsyncadd [#allocation6], %s23
      %s26 = sshll.u32 [#allocation5], 4
      %s27 = int_to_ptr.vmem [resolvable:$true] %s26
      %29 = dma.hbm_to_vmem [thread:$0]  %s1, 1024, %s27, [#allocation6]
    $region9: #{tpu_custom_call.1} parent=1 // pred_fallthru
      _
    // Predicated region
    $region10: #{tpu_custom_call.1} parent=1 // pred_check
      _
    $region11: #{tpu_custom_call.1} parent=1 // pred_check_branch
      %31 = sbr.rel (0) target = $region13
    $region12: #{tpu_custom_call.1} parent=1 // pred_region
      %32 = dma.done [#allocation3], 1024
    $region13: #{tpu_custom_call.1} parent=1 // pred_fallthru
      _
    // Predicated region
    $region14: #{tpu_custom_call.1} parent=1 // pred_check
      _
    $region15: #{tpu_custom_call.1} parent=1 // pred_check_branch
      %34 = sbr.rel (0) target = $region17
    $region16: #{tpu_custom_call.1} parent=1 // pred_region
      %35 = dma.done [#allocation6], 1024
    $region17: #{tpu_custom_call.1} parent=1 // pred_fallthru
      _
    %v36 = vld [vmem:[#allocation2] sm:$0xff]
    %v37 = vld [vmem:[#allocation2 + $0x8] sm:$0xff]
    %v38 = vld [vmem:[#allocation2 + $0x10] sm:$0xff]
    %v39 = vld [vmem:[#allocation2 + $0x18] sm:$0xff]
    %v40 = vld [vmem:[#allocation2 + $0x20] sm:$0xff]
    %v41 = vld [vmem:[#allocation2 + $0x28] sm:$0xff]
    %v42 = vld [vmem:[#allocation2 + $0x30] sm:$0xff]
    %v43 = vld [vmem:[#allocation2 + $0x38] sm:$0xff]
    %v44 = vld [vmem:[#allocation5] sm:$0xff]
    %v45 = vld [vmem:[#allocation5 + $0x8] sm:$0xff]
    %v46 = vld [vmem:[#allocation5 + $0x10] sm:$0xff]
    %v47 = vld [vmem:[#allocation5 + $0x18] sm:$0xff]
    %v48 = vld [vmem:[#allocation5 + $0x20] sm:$0xff]
    %v49 = vld [vmem:[#allocation5 + $0x28] sm:$0xff]
    %v50 = vld [vmem:[#allocation5 + $0x30] sm:$0xff]
    %v51 = vld [vmem:[#allocation5 + $0x38] sm:$0xff]
    %v52 = vmax.f32 %v36, 0.0
    %v53 = vmax.f32 %v37, 0.0
    %v54 = vmax.f32 %v38, 0.0
    %v55 = vmax.f32 %v39, 0.0
    %v56 = vmax.f32 %v40, 0.0
    %v57 = vmax.f32 %v41, 0.0
    %v58 = vmax.f32 %v42, 0.0
    %v59 = vmax.f32 %v43, 0.0
    %v60 = vand.u32 2147483647, %v36
    %v61 = vand.u32 2147483647, %v37
    %v62 = vand.u32 2147483647, %v38
    %v63 = vand.u32 2147483647, %v39
    %v64 = vand.u32 2147483647, %v40
    %v65 = vand.u32 2147483647, %v41
    %v66 = vand.u32 2147483647, %v42
    %v67 = vand.u32 2147483647, %v43
    %v68 = vsub.f32 0.0, %v60
    %v69 = vsub.f32 0.0, %v61
    %v70 = vsub.f32 0.0, %v62
    %v71 = vsub.f32 0.0, %v63
    %v72 = vsub.f32 0.0, %v64
    %v73 = vsub.f32 0.0, %v65
    %v74 = vsub.f32 0.0, %v66
    %v75 = vsub.f32 0.0, %v67
    %v76 = vmul.f32 %v68, 1.442695
    %v77 = vpow.pop %v76
    %v78 = vmul.f32 %v69, 1.442695
    %v79 = vpow.pop %v78
    %v80 = vmul.f32 %v70, 1.442695
    %v81 = vpow.pop %v80
    %v82 = vmul.f32 %v71, 1.442695
    %v83 = vpow.pop %v82
    %v84 = vmul.f32 %v72, 1.442695
    %v85 = vpow.pop %v84
    %v86 = vmul.f32 %v73, 1.442695
    %v87 = vpow.pop %v86
    %v88 = vmul.f32 %v74, 1.442695
    %v89 = vpow.pop %v88
    %v90 = vmul.f32 %v75, 1.442695
    %v91 = vpow.pop %v90
    %v92 = vadd.f32 %v77, 1.0
    %v93 = vadd.f32 %v79, 1.0
    %v94 = vadd.f32 %v81, 1.0
    %v95 = vadd.f32 %v83, 1.0
    %v96 = vadd.f32 %v85, 1.0
    %v97 = vadd.f32 %v87, 1.0
    %v98 = vadd.f32 %v89, 1.0
    %v99 = vadd.f32 %v91, 1.0
    %v100 = vlog2.pop %v92
    %v101 = vmul.f32 %v100, 0.6931472
    %v102 = vlog2.pop %v93
    %v103 = vmul.f32 %v102, 0.6931472
    %v104 = vlog2.pop %v94
    %v105 = vmul.f32 %v104, 0.6931472
    %v106 = vlog2.pop %v95
    %v107 = vmul.f32 %v106, 0.6931472
    %v108 = vlog2.pop %v96
    %v109 = vmul.f32 %v108, 0.6931472
    %v110 = vlog2.pop %v97
    %v111 = vmul.f32 %v110, 0.6931472
    %v112 = vlog2.pop %v98
    %v113 = vmul.f32 %v112, 0.6931472
    %v114 = vlog2.pop %v99
    %v115 = vmul.f32 %v114, 0.6931472
    %v116 = vadd.f32 %v52, %v101
    %v117 = vadd.f32 %v53, %v103
    %v118 = vadd.f32 %v54, %v105
    %v119 = vadd.f32 %v55, %v107
    %v120 = vadd.f32 %v56, %v109
    %v121 = vadd.f32 %v57, %v111
    %v122 = vadd.f32 %v58, %v113
    %v123 = vadd.f32 %v59, %v115
    %v124 = vsub.f32 %v36, %v116
    %v125 = vsub.f32 %v37, %v117
    %v126 = vsub.f32 %v38, %v118
    %v127 = vsub.f32 %v39, %v119
    %v128 = vsub.f32 %v40, %v120
    %v129 = vsub.f32 %v41, %v121
    %v130 = vsub.f32 %v42, %v122
    %v131 = vsub.f32 %v43, %v123
    %v132 = vsub.f32 0.0, %v116
    %v133 = vsub.f32 0.0, %v117
    %v134 = vsub.f32 0.0, %v118
    %v135 = vsub.f32 0.0, %v119
    %v136 = vsub.f32 0.0, %v120
    %v137 = vsub.f32 0.0, %v121
    %v138 = vsub.f32 0.0, %v122
    %v139 = vsub.f32 0.0, %v123
    %v140 = vmax.f32 %v124, -9.2103405
    %v141 = vmax.f32 %v125, -9.2103405
    %v142 = vmax.f32 %v126, -9.2103405
    %v143 = vmax.f32 %v127, -9.2103405
    %v144 = vmax.f32 %v128, -9.2103405
    %v145 = vmax.f32 %v129, -9.2103405
    %v146 = vmax.f32 %v130, -9.2103405
    %v147 = vmax.f32 %v131, -9.2103405
    %v148 = vmin.f32 %v140, -0.000100005
    %v149 = vmin.f32 %v141, -0.000100005
    %v150 = vmin.f32 %v142, -0.000100005
    %v151 = vmin.f32 %v143, -0.000100005
    %v152 = vmin.f32 %v144, -0.000100005
    %v153 = vmin.f32 %v145, -0.000100005
    %v154 = vmin.f32 %v146, -0.000100005
    %v155 = vmin.f32 %v147, -0.000100005
    %v156 = vmax.f32 %v132, -9.2103405
    %v157 = vmax.f32 %v133, -9.2103405
    %v158 = vmax.f32 %v134, -9.2103405
    %v159 = vmax.f32 %v135, -9.2103405
    %v160 = vmax.f32 %v136, -9.2103405
    %v161 = vmax.f32 %v137, -9.2103405
    %v162 = vmax.f32 %v138, -9.2103405
    %v163 = vmax.f32 %v139, -9.2103405
    %v164 = vmin.f32 %v156, -0.000100005
    %v165 = vmin.f32 %v157, -0.000100005
    %v166 = vmin.f32 %v158, -0.000100005
    %v167 = vmin.f32 %v159, -0.000100005
    %v168 = vmin.f32 %v160, -0.000100005
    %v169 = vmin.f32 %v161, -0.000100005
    %v170 = vmin.f32 %v162, -0.000100005
    %v171 = vmin.f32 %v163, -0.000100005
    %v172 = vmul.f32 %v124, 1.442695
    %v173 = vpow.pop %v172
    %v174 = vmul.f32 %v125, 1.442695
    %v175 = vpow.pop %v174
    %v176 = vmul.f32 %v126, 1.442695
    %v177 = vpow.pop %v176
    %v178 = vmul.f32 %v127, 1.442695
    %v179 = vpow.pop %v178
    %v180 = vmul.f32 %v128, 1.442695
    %v181 = vpow.pop %v180
    %v182 = vmul.f32 %v129, 1.442695
    %v183 = vpow.pop %v182
    %v184 = vmul.f32 %v130, 1.442695
    %v185 = vpow.pop %v184
    %v186 = vmul.f32 %v131, 1.442695
    %v187 = vpow.pop %v186
    %v188 = vmax.f32 %v173, 0.0001
    %v189 = vmax.f32 %v175, 0.0001
    %v190 = vmax.f32 %v177, 0.0001
    %v191 = vmax.f32 %v179, 0.0001
    %v192 = vmax.f32 %v181, 0.0001
    %v193 = vmax.f32 %v183, 0.0001
    %v194 = vmax.f32 %v185, 0.0001
    %v195 = vmax.f32 %v187, 0.0001
    %v196 = vmin.f32 %v188, 0.9999
    %v197 = vmin.f32 %v189, 0.9999
    %v198 = vmin.f32 %v190, 0.9999
    %v199 = vmin.f32 %v191, 0.9999
    %v200 = vmin.f32 %v192, 0.9999
    %v201 = vmin.f32 %v193, 0.9999
    %v202 = vmin.f32 %v194, 0.9999
    %v203 = vmin.f32 %v195, 0.9999
    %v204 = vsub.f32 1.0, %v196
    %v205 = vsub.f32 1.0, %v197
    %v206 = vsub.f32 1.0, %v198
    %v207 = vsub.f32 1.0, %v199
    %v208 = vsub.f32 1.0, %v200
    %v209 = vsub.f32 1.0, %v201
    %v210 = vsub.f32 1.0, %v202
    %v211 = vsub.f32 1.0, %v203
    %vm212 = vcmp.eq.f32.partialorder %v44, 1.0
    %vm213 = vcmp.eq.f32.partialorder %v45, 1.0
    %vm214 = vcmp.eq.f32.partialorder %v46, 1.0
    %vm215 = vcmp.eq.f32.partialorder %v47, 1.0
    %vm216 = vcmp.eq.f32.partialorder %v48, 1.0
    %vm217 = vcmp.eq.f32.partialorder %v49, 1.0
    %vm218 = vcmp.eq.f32.partialorder %v50, 1.0
    %vm219 = vcmp.eq.f32.partialorder %v51, 1.0
    %v220 = vsel %vm212, 1, 0
    %v221 = vsel %vm213, 1, 0
    %v222 = vsel %vm214, 1, 0
    %v223 = vsel %vm215, 1, 0
    %v224 = vsel %vm216, 1, 0
    %v225 = vsel %vm217, 1, 0
    %v226 = vsel %vm218, 1, 0
    %v227 = vsel %vm219, 1, 0
    %v228 = vcvt.s32.f32 %v220
    %v229 = vcvt.s32.f32 %v221
    %v230 = vcvt.s32.f32 %v222
    %v231 = vcvt.s32.f32 %v223
    %v232 = vcvt.s32.f32 %v224
    %v233 = vcvt.s32.f32 %v225
    %v234 = vcvt.s32.f32 %v226
    %v235 = vcvt.s32.f32 %v227
    %vm236 = vcmp.lt.f32.partialorder %v44, 1.0
    %vm237 = vcmp.lt.f32.partialorder %v45, 1.0
    %vm238 = vcmp.lt.f32.partialorder %v46, 1.0
    %vm239 = vcmp.lt.f32.partialorder %v47, 1.0
    %vm240 = vcmp.lt.f32.partialorder %v48, 1.0
    %vm241 = vcmp.lt.f32.partialorder %v49, 1.0
    %vm242 = vcmp.lt.f32.partialorder %v50, 1.0
    %vm243 = vcmp.lt.f32.partialorder %v51, 1.0
    %v244 = vsel %vm236, 1, 0
    %v245 = vsel %vm237, 1, 0
    %v246 = vsel %vm238, 1, 0
    %v247 = vsel %vm239, 1, 0
    %v248 = vsel %vm240, 1, 0
    %v249 = vsel %vm241, 1, 0
    %v250 = vsel %vm242, 1, 0
    %v251 = vsel %vm243, 1, 0
    %v252 = vcvt.s32.f32 %v244
    %v253 = vcvt.s32.f32 %v245
    %v254 = vcvt.s32.f32 %v246
    %v255 = vcvt.s32.f32 %v247
    %v256 = vcvt.s32.f32 %v248
    %v257 = vcvt.s32.f32 %v249
    %v258 = vcvt.s32.f32 %v250
    %v259 = vcvt.s32.f32 %v251
    %v260 = vsub.f32 1.0, %v44
    %v261 = vsub.f32 1.0, %v45
    %v262 = vsub.f32 1.0, %v46
    %v263 = vsub.f32 1.0, %v47
    %v264 = vsub.f32 1.0, %v48
    %v265 = vsub.f32 1.0, %v49
    %v266 = vsub.f32 1.0, %v50
    %v267 = vsub.f32 1.0, %v51
    %v268 = vmul.f32 %v260, %v260
    %v269 = vmul.f32 %v261, %v261
    %v270 = vmul.f32 %v262, %v262
    %v271 = vmul.f32 %v263, %v263
    %v272 = vmul.f32 %v264, %v264
    %v273 = vmul.f32 %v265, %v265
    %v274 = vmul.f32 %v266, %v266
    %v275 = vmul.f32 %v267, %v267
    %v276 = vmul.f32 %v268, %v268
    %v277 = vmul.f32 %v269, %v269
    %v278 = vmul.f32 %v270, %v270
    %v279 = vmul.f32 %v271, %v271
    %v280 = vmul.f32 %v272, %v272
    %v281 = vmul.f32 %v273, %v273
    %v282 = vmul.f32 %v274, %v274
    %v283 = vmul.f32 %v275, %v275
    %v284 = vmul.f32 %v204, %v204
    %v285 = vmul.f32 %v205, %v205
    %v286 = vmul.f32 %v206, %v206
    %v287 = vmul.f32 %v207, %v207
    %v288 = vmul.f32 %v208, %v208
    %v289 = vmul.f32 %v209, %v209
    %v290 = vmul.f32 %v210, %v210
    %v291 = vmul.f32 %v211, %v211
    %v292 = vmul.f32 %v148, %v284
    %v293 = vmul.f32 %v149, %v285
    %v294 = vmul.f32 %v150, %v286
    %v295 = vmul.f32 %v151, %v287
    %v296 = vmul.f32 %v152, %v288
    %v297 = vmul.f32 %v153, %v289
    %v298 = vmul.f32 %v154, %v290
    %v299 = vmul.f32 %v155, %v291
    %v300 = vmul.f32 %v292, %v228
    %v301 = vmul.f32 %v293, %v229
    %v302 = vmul.f32 %v294, %v230
    %v303 = vmul.f32 %v295, %v231
    %v304 = vmul.f32 %v296, %v232
    %v305 = vmul.f32 %v297, %v233
    %v306 = vmul.f32 %v298, %v234
    %v307 = vmul.f32 %v299, %v235
    %v308 = vmul.f32 %v196, %v196
    %v309 = vmul.f32 %v197, %v197
    %v310 = vmul.f32 %v198, %v198
    %v311 = vmul.f32 %v199, %v199
    %v312 = vmul.f32 %v200, %v200
    %v313 = vmul.f32 %v201, %v201
    %v314 = vmul.f32 %v202, %v202
    %v315 = vmul.f32 %v203, %v203
    %v316 = vmul.f32 %v164, %v308
    %v317 = vmul.f32 %v165, %v309
    %v318 = vmul.f32 %v166, %v310
    %v319 = vmul.f32 %v167, %v311
    %v320 = vmul.f32 %v168, %v312
    %v321 = vmul.f32 %v169, %v313
    %v322 = vmul.f32 %v170, %v314
    %v323 = vmul.f32 %v171, %v315
    %v324 = vmul.f32 %v316, %v276
    %v325 = vmul.f32 %v317, %v277
    %v326 = vmul.f32 %v318, %v278
    %v327 = vmul.f32 %v319, %v279
    %v328 = vmul.f32 %v320, %v280
    %v329 = vmul.f32 %v321, %v281
    %v330 = vmul.f32 %v322, %v282
    %v331 = vmul.f32 %v323, %v283
    %v332 = vmul.f32 %v324, %v252
    %v333 = vmul.f32 %v325, %v253
    %v334 = vmul.f32 %v326, %v254
    %v335 = vmul.f32 %v327, %v255
    %v336 = vmul.f32 %v328, %v256
    %v337 = vmul.f32 %v329, %v257
    %v338 = vmul.f32 %v330, %v258
    %v339 = vmul.f32 %v331, %v259
    %v340 = vadd.f32 %v300, %v332
    %v341 = vadd.f32 %v301, %v333
    %v342 = vadd.f32 %v302, %v334
    %v343 = vadd.f32 %v303, %v335
    %v344 = vadd.f32 %v304, %v336
    %v345 = vadd.f32 %v305, %v337
    %v346 = vadd.f32 %v306, %v338
    %v347 = vadd.f32 %v307, %v339
    %v348 = vadd.f32 %v340, %v341
    %v349 = vadd.f32 %v348, %v342
    %v350 = vadd.f32 %v349, %v343
    %v351 = vadd.f32 %v350, %v344
    %v352 = vadd.f32 %v351, %v345
    %v353 = vadd.f32 %v352, %v346
    %v354 = vadd.f32 %v353, %v347
    %355 = vadd.xlane.f32.xlu0 %v354
    %v356 = vpop.xlane.xlu0 %355
    %v357 = vrot.slane %v356, 4
    %v358 = vadd.f32 %v356, %v357
    %v359 = vrot.slane %v358, 2
    %v360 = vadd.f32 %v358, %v359
    %v361 = vrot.slane %v360, 1
    %v362 = vadd.f32 %v360, %v361
    %s363 = vtos %v362
    %s364 = scalar_lea.smem [#allocation7], 0
    %365 = sst [smem:[%s364]] %s363
    %v366 = vadd.f32 %v228, %v229
    %v367 = vadd.f32 %v366, %v230
    %v368 = vadd.f32 %v367, %v231
    %v369 = vadd.f32 %v368, %v232
    %v370 = vadd.f32 %v369, %v233
    %v371 = vadd.f32 %v370, %v234
    %v372 = vadd.f32 %v371, %v235
    %373 = vadd.xlane.f32.xlu0 %v372
    %v374 = vpop.xlane.xlu0 %373
    %v375 = vrot.slane %v374, 4
    %v376 = vadd.f32 %v374, %v375
    %v377 = vrot.slane %v376, 2
    %v378 = vadd.f32 %v376, %v377
    %v379 = vrot.slane %v378, 1
    %v380 = vadd.f32 %v378, %v379
    %s381 = vtos %v380
    %s382 = scalar_lea.smem [#allocation7], 1
    %383 = sst [smem:[%s382]] %s381
    // Predicated region
    $region18: #{tpu_custom_call.1} parent=1 // pred_check
      _
    $region19: #{tpu_custom_call.1} parent=1 // pred_check_branch
      %385 = sbr.rel (0) target = $region21
    $region20: #{tpu_custom_call.1} parent=1 // pred_region
      %s387 = ssub.s32 16, 16
      %388 = vsyncadd [#allocation4], %s387
      %391 = dma.smem_to_hbm [#allocation7], 16, %s2, [#allocation4]
    $region21: #{tpu_custom_call.1} parent=1 // pred_fallthru
      _
    // Predicated region
    $region22: #{tpu_custom_call.1} parent=1 // pred_check
      _
    $region23: #{tpu_custom_call.1} parent=1 // pred_check_branch
      %393 = sbr.rel (0) target = $region25
    $region24: #{tpu_custom_call.1} parent=1 // pred_region
      %394 = dma.done [#allocation4], 16
    $region25: #{tpu_custom_call.1} parent=1 // pred_fallthru
      _
    %395 = sfence
    %396 = vsyncpa [#allocation3], 1
    %397 = vsyncpa [#allocation6], 1
    %398 = vsyncpa [#allocation4], 1

</llo_original>
